<compile_context>
chip_gen: v5e
topology: v5e:2x2
jax: 0.10.0
libtpu: 0.0.40
codegen_flags: <defaults>
</compile_context>

<pallas_src>
import functools

import jax
import jax.numpy as jnp
from jax.experimental import pallas as pl
from jax.experimental.pallas import tpu as pltpu

EPS = 1e-5           # BatchNorm2d default eps
NEG_SLOPE = 0.2      # LeakyReLU slope
VMEM_LIMIT = 32 * 1024 * 1024   # safe on v5e (128 MiB), v6e (128 MiB), v7x (64 MiB)


def _round_up(x, m):
    return (x + m - 1) // m * m


# --------------------------------------------------------------------------
# Pass 1 (BN path): tiled conv-as-matmul + one-pass per-channel sum/sumsq.
# Grid = (Cout_tiles, M_tiles, K_tiles); Cout tiles are independent (parallel),
# M and K are sequential reductions (matmul accumulate over K, stats over M).
# Emits raw conv y (f32, HBM) plus per-channel scale/shift for the apply pass.
# --------------------------------------------------------------------------
def _conv_stats_kernel(p_ref, w_ref, g_ref, b_ref,
                       y_ref, scale_ref, shift_ref,
                       acc_ref, sum_ref, sq_ref, *, m_total):
    m = pl.program_id(1)
    k = pl.program_id(2)
    nm = pl.num_programs(1)
    nk = pl.num_programs(2)

    @pl.when(k == 0)
    def _():
        acc_ref[...] = jnp.zeros_like(acc_ref)

    @pl.when((m == 0) & (k == 0))
    def _():
        sum_ref[...] = jnp.zeros_like(sum_ref)
        sq_ref[...] = jnp.zeros_like(sq_ref)

    acc_ref[...] += jnp.dot(p_ref[...], w_ref[...],
                            preferred_element_type=jnp.float32)

    @pl.when(k == nk - 1)
    def _():
        y = acc_ref[...]
        y_ref[...] = y
        sum_ref[...] += jnp.sum(y, axis=0, keepdims=True)
        sq_ref[...] += jnp.sum(y * y, axis=0, keepdims=True)

    @pl.when((m == nm - 1) & (k == nk - 1))
    def _():
        inv_m = 1.0 / m_total
        mean = sum_ref[...] * inv_m
        var = jnp.maximum(sq_ref[...] * inv_m - mean * mean, 0.0)
        inv_std = jax.lax.rsqrt(var + EPS)
        scale = g_ref[...] * inv_std
        scale_ref[...] = scale
        shift_ref[...] = b_ref[...] - mean * scale


# --------------------------------------------------------------------------
# Pass 2 (BN path): y*scale + shift, then LeakyReLU.  Fully parallel grid.
# --------------------------------------------------------------------------
def _bn_apply_kernel(y_ref, s_ref, t_ref, o_ref):
    z = y_ref[...] * s_ref[...] + t_ref[...]
    o_ref[...] = jnp.where(z >= 0, z, NEG_SLOPE * z)


# --------------------------------------------------------------------------
# Innermost path: tiled conv-as-matmul + ReLU finalize.
# --------------------------------------------------------------------------
def _conv_relu_kernel(p_ref, w_ref, o_ref, acc_ref):
    @pl.when(pl.program_id(2) == 0)
    def _():
        acc_ref[...] = jnp.zeros_like(acc_ref)

    acc_ref[...] += jnp.dot(p_ref[...], w_ref[...],
                            preferred_element_type=jnp.float32)

    @pl.when(pl.program_id(2) == pl.num_programs(2) - 1)
    def _():
        o_ref[...] = jnp.maximum(acc_ref[...], 0.0)


def unet_left_block(x_nchw, weight, gamma=None, beta=None, *, innermost=False,
                    kernel_size=4, stride=2, pad=1,
                    tm=256, tn=128, tk=128):
    """Forward pass of UnetLeftBlock (default BatchNorm2d norm_layer => no conv bias).

    x_nchw : (N, Cin, H, W) float32
    weight : (Cout, Cin, kh, kw) float32   (PyTorch Conv2d layout)
    gamma, beta : (Cout,) float32          (BatchNorm affine params; unused if innermost)
    """
    N, Cin, H, W = x_nchw.shape
    Cout = weight.shape[0]
    Ho = (H + 2 * pad - kernel_size) // stride + 1
    Wo = (W + 2 * pad - kernel_size) // stride + 1

    # --- glue: NCHW -> NHWC, pad, im2col (kh-major, kw, Cin ordering) ---
    x = jnp.transpose(x_nchw, (0, 2, 3, 1))
    xp = jnp.pad(x, ((0, 0), (pad, pad), (pad, pad), (0, 0)))
    cols = []
    for kh in range(kernel_size):
        for kw in range(kernel_size):
            cols.append(xp[:, kh:kh + stride * Ho:stride,
                            kw:kw + stride * Wo:stride, :])          # (N, Ho, Wo, Cin)
    patches = jnp.concatenate(cols, axis=-1).reshape(
        N * Ho * Wo, kernel_size * kernel_size * Cin)

    # torch weight (Cout, Cin, kh, kw) -> (kh, kw, Cin, Cout) -> (K, Cout)
    w_mat = jnp.transpose(weight, (2, 3, 1, 0)).reshape(
        kernel_size * kernel_size * Cin, Cout)

    M, K = patches.shape

    # --- pad to tile multiples; output lane dim (Cout) padded to >=128 ---
    tm = min(tm, _round_up(M, 128))
    M_pad = _round_up(M, tm)
    K_pad = _round_up(K, tk)
    C_pad = _round_up(Cout, tn)

    patches_p = jnp.pad(patches, ((0, M_pad - M), (0, K_pad - K))).astype(jnp.bfloat16)
    w_p = jnp.pad(w_mat, ((0, K_pad - K), (0, C_pad - Cout))).astype(jnp.bfloat16)

    if innermost:
        out = pl.pallas_call(
            _conv_relu_kernel,
            out_shape=jax.ShapeDtypeStruct((M_pad, C_pad), jnp.float32),
            grid=(M_pad // tm, C_pad // tn, K_pad // tk),
            in_specs=[
                pl.BlockSpec((tm, tk), lambda m, n, k: (m, k)),
                pl.BlockSpec((tk, tn), lambda m, n, k: (k, n)),
            ],
            out_specs=pl.BlockSpec((tm, tn), lambda m, n, k: (m, n)),
            scratch_shapes=[pltpu.VMEM((tm, tn), jnp.float32)],
            compiler_params=pltpu.CompilerParams(
                dimension_semantics=("parallel", "parallel", "arbitrary"),
                vmem_limit_bytes=VMEM_LIMIT),
        )(patches_p, w_p)
    else:
        gamma_p = jnp.pad(gamma.astype(jnp.float32), (0, C_pad - Cout)).reshape(1, C_pad)
        beta_p = jnp.pad(beta.astype(jnp.float32), (0, C_pad - Cout)).reshape(1, C_pad)

        # Pass 1: conv tiles + per-channel sum/sumsq -> (y, scale, shift)
        y_pad, scale, shift = pl.pallas_call(
            functools.partial(_conv_stats_kernel, m_total=float(M)),
            out_shape=(
                jax.ShapeDtypeStruct((M_pad, C_pad), jnp.float32),
                jax.ShapeDtypeStruct((1, C_pad), jnp.float32),
                jax.ShapeDtypeStruct((1, C_pad), jnp.float32),
            ),
            grid=(C_pad // tn, M_pad // tm, K_pad // tk),
            in_specs=[
                pl.BlockSpec((tm, tk), lambda n, m, k: (m, k)),
                pl.BlockSpec((tk, tn), lambda n, m, k: (k, n)),
                pl.BlockSpec((1, tn), lambda n, m, k: (0, n)),
                pl.BlockSpec((1, tn), lambda n, m, k: (0, n)),
            ],
            out_specs=(
                pl.BlockSpec((tm, tn), lambda n, m, k: (m, n)),
                pl.BlockSpec((1, tn), lambda n, m, k: (0, n)),
                pl.BlockSpec((1, tn), lambda n, m, k: (0, n)),
            ),
            scratch_shapes=[
                pltpu.VMEM((tm, tn), jnp.float32),   # matmul accumulator
                pltpu.VMEM((1, tn), jnp.float32),    # per-channel sum
                pltpu.VMEM((1, tn), jnp.float32),    # per-channel sum of squares
            ],
            compiler_params=pltpu.CompilerParams(
                dimension_semantics=("parallel", "arbitrary", "arbitrary"),
                vmem_limit_bytes=VMEM_LIMIT),
        )(patches_p, w_p, gamma_p, beta_p)

        # Pass 2: normalize + LeakyReLU (elementwise FMA + select, lane-dense)
        out = pl.pallas_call(
            _bn_apply_kernel,
            out_shape=jax.ShapeDtypeStruct((M_pad, C_pad), jnp.float32),
            grid=(M_pad // tm, C_pad // tn),
            in_specs=[
                pl.BlockSpec((tm, tn), lambda m, n: (m, n)),
                pl.BlockSpec((1, tn), lambda m, n: (0, n)),
                pl.BlockSpec((1, tn), lambda m, n: (0, n)),
            ],
            out_specs=pl.BlockSpec((tm, tn), lambda m, n: (m, n)),
            compiler_params=pltpu.CompilerParams(
                dimension_semantics=("parallel", "parallel"),
                vmem_limit_bytes=VMEM_LIMIT),
        )(y_pad, scale, shift)

    # strip padding, (M, Cout) -> (N, Ho, Wo, Cout) -> NCHW
    out = out[:M, :Cout].reshape(N, Ho, Wo, Cout)
    return jnp.transpose(out, (0, 3, 1, 2))


# --------------------------------------------------------------------------
# Pure-JAX references for checking
# --------------------------------------------------------------------------
def _conv_ref(x, weight):
    return jax.lax.conv_general_dilated(
        x, weight, window_strides=(2, 2), padding=((1, 1), (1, 1)),
        dimension_numbers=("NCHW", "OIHW", "NCHW"))


def _reference_bn(x, weight, gamma, beta):
    conv = _conv_ref(x, weight)
    Cout = weight.shape[0]
    mean = jnp.mean(conv, axis=(0, 2, 3), keepdims=True)
    var = jnp.mean((conv - mean) ** 2, axis=(0, 2, 3), keepdims=True)
    ref = (conv - mean) * jax.lax.rsqrt(var + EPS)
    ref = ref * gamma.reshape(1, Cout, 1, 1) + beta.reshape(1, Cout, 1, 1)
    return jnp.where(ref >= 0, ref, NEG_SLOPE * ref)


if __name__ == "__main__":
    key = jax.random.PRNGKey(0)
    k1, k2, k3, k4, k5, k6 = jax.random.split(key, 6)

    # --- Test 1: default path, small shape (single-tile grid) ---
    N, Cin, H, W = 2, 4, 16, 16
    Cout = 8
    x = jax.random.normal(k1, (N, Cin, H, W), jnp.float32)
    weight = jax.random.normal(k2, (Cout, Cin, 4, 4), jnp.float32) * 0.1
    gamma = 1.0 + 0.1 * jax.random.normal(k3, (Cout,), jnp.float32)
    beta = 0.1 * jax.random.normal(k4, (Cout,), jnp.float32)

    y = jax.block_until_ready(unet_left_block(x, weight, gamma, beta))
    ref = _reference_bn(x, weight, gamma, beta)
    assert y.shape == (N, Cout, H // 2, W // 2), y.shape
    # bf16 matmul operands (f32 accumulate) => deliberately widened tolerance.
    assert jnp.allclose(y, ref, atol=3e-2, rtol=3e-2), float(jnp.max(jnp.abs(y - ref)))

    # --- Test 2: default path, multi-tile grid (M, K, Cout all > one tile) ---
    N2, Cin2, H2, W2, Cout2 = 2, 16, 32, 32, 160
    x2 = jax.random.normal(k5, (N2, Cin2, H2, W2), jnp.float32)
    w2 = jax.random.normal(k6, (Cout2, Cin2, 4, 4), jnp.float32) * 0.05
    g2 = jnp.ones((Cout2,), jnp.float32)
    b2 = jnp.zeros((Cout2,), jnp.float32)
    y2 = jax.block_until_ready(unet_left_block(x2, w2, g2, b2, tm=128))
    ref2 = _reference_bn(x2, w2, g2, b2)
    assert y2.shape == (N2, Cout2, H2 // 2, W2 // 2), y2.shape
    assert jnp.allclose(y2, ref2, atol=3e-2, rtol=3e-2), float(jnp.max(jnp.abs(y2 - ref2)))

    # --- Test 3: innermost path (Conv -> ReLU) ---
    y3 = jax.block_until_ready(
        unet_left_block(x, weight, None, None, innermost=True))
    ref3 = jnp.maximum(_conv_ref(x, weight), 0.0)
    assert y3.shape == ref3.shape, y3.shape
    assert jnp.allclose(y3, ref3, atol=3e-2, rtol=3e-2), float(jnp.max(jnp.abs(y3 - ref3)))

    print("KERNEL_OK")
</pallas_src>

<mosaic_0001>
module attributes {stable_mosaic.version = 11 : i64} {
  func.func @_conv_stats_kernel(%arg0: i32, %arg1: i32, %arg2: i32, %arg3: memref<128x128xbf16, #tpu.memory_space<vmem>>, %arg4: memref<128x128xbf16, #tpu.memory_space<vmem>>, %arg5: memref<1x128xf32, #tpu.memory_space<vmem>>, %arg6: memref<1x128xf32, #tpu.memory_space<vmem>>, %arg7: memref<128x128xf32, #tpu.memory_space<vmem>>, %arg8: memref<1x128xf32, #tpu.memory_space<vmem>>, %arg9: memref<1x128xf32, #tpu.memory_space<vmem>>, %arg10: memref<128x128xf32, #tpu.memory_space<vmem>>, %arg11: memref<1x128xf32, #tpu.memory_space<vmem>>, %arg12: memref<1x128xf32, #tpu.memory_space<vmem>>) attributes {dimension_semantics = [#tpu.dimension_semantics<parallel>, #tpu.dimension_semantics<arbitrary>, #tpu.dimension_semantics<arbitrary>], iteration_bounds = array<i64: 1, 1, 1>, scalar_prefetch = 0 : i64, scratch_operands = 3 : i64, tpu.core_type = #tpu.core_type<tc>, window_params = [{transform_indices = @transform_0, window_bounds = array<i64: 128, 128>}, {transform_indices = @transform_1, window_bounds = array<i64: 128, 128>}, {transform_indices = @transform_2, window_bounds = array<i64: 1, 128>}, {transform_indices = @transform_3, window_bounds = array<i64: 1, 128>}, {transform_indices = @transform_4, window_bounds = array<i64: 128, 128>}, {transform_indices = @transform_5, window_bounds = array<i64: 1, 128>}, {transform_indices = @transform_6, window_bounds = array<i64: 1, 128>}]} {
    %c0_i32 = arith.constant 0 : i32
    %0 = arith.cmpi eq, %arg2, %c0_i32 : i32
    %1 = arith.extui %0 : i1 to i32
    %c0_i32_0 = arith.constant 0 : i32
    %2 = arith.cmpi ne, %1, %c0_i32_0 : i32
    scf.if %2 {
      %cst_16 = arith.constant 0.000000e+00 : f32
      %22 = vector.broadcast %cst_16 : f32 to vector<128x128xf32>
      %c0_17 = arith.constant 0 : index
      %c0_18 = arith.constant 0 : index
      %23 = vector.load %arg10[%c0_17, %c0_18] : memref<128x128xf32, #tpu.memory_space<vmem>>, vector<128x128xf32>
      tpu.vector_store %arg10[%c0_17, %c0_18], %22 {strides = array<i32>} : memref<128x128xf32, #tpu.memory_space<vmem>>, vector<128x128xf32>,
    } else {
    }
    %c0_i32_1 = arith.constant 0 : i32
    %3 = arith.cmpi eq, %arg1, %c0_i32_1 : i32
    %c0_i32_2 = arith.constant 0 : i32
    %4 = arith.cmpi eq, %arg2, %c0_i32_2 : i32
    %5 = arith.andi %3, %4 : i1
    %6 = arith.extui %5 : i1 to i32
    %c0_i32_3 = arith.constant 0 : i32
    %7 = arith.cmpi ne, %6, %c0_i32_3 : i32
    scf.if %7 {
      %cst_16 = arith.constant 0.000000e+00 : f32
      %22 = vector.broadcast %cst_16 : f32 to vector<1x128xf32>
      %c0_17 = arith.constant 0 : index
      %c0_18 = arith.constant 0 : index
      %23 = vector.load %arg11[%c0_17, %c0_18] : memref<1x128xf32, #tpu.memory_space<vmem>>, vector<1x128xf32>
      tpu.vector_store %arg11[%c0_17, %c0_18], %22 {strides = array<i32>} : memref<1x128xf32, #tpu.memory_space<vmem>>, vector<1x128xf32>,
      %cst_19 = arith.constant 0.000000e+00 : f32
      %24 = vector.broadcast %cst_19 : f32 to vector<1x128xf32>
      %c0_20 = arith.constant 0 : index
      %c0_21 = arith.constant 0 : index
      %25 = vector.load %arg12[%c0_20, %c0_21] : memref<1x128xf32, #tpu.memory_space<vmem>>, vector<1x128xf32>
      tpu.vector_store %arg12[%c0_20, %c0_21], %24 {strides = array<i32>} : memref<1x128xf32, #tpu.memory_space<vmem>>, vector<1x128xf32>,
    } else {
    }
    %c0 = arith.constant 0 : index
    %c0_4 = arith.constant 0 : index
    %8 = vector.load %arg10[%c0, %c0_4] : memref<128x128xf32, #tpu.memory_space<vmem>>, vector<128x128xf32>
    %c0_5 = arith.constant 0 : index
    %c0_6 = arith.constant 0 : index
    %9 = vector.load %arg3[%c0_5, %c0_6] : memref<128x128xbf16, #tpu.memory_space<vmem>>, vector<128x128xbf16>
    %c0_7 = arith.constant 0 : index
    %c0_8 = arith.constant 0 : index
    %10 = vector.load %arg4[%c0_7, %c0_8] : memref<128x128xbf16, #tpu.memory_space<vmem>>, vector<128x128xbf16>
    %cst = arith.constant dense<0.000000e+00> : vector<128x128xf32>
    %11 = tpu.matmul %9, %10, %cst {dimension_numbers = #tpu.dot_dimension_numbers<[1], [0], [0], [1], [0, 0, 1, 1], [], []>} : vector<128x128xbf16>, vector<128x128xbf16>, vector<128x128xf32> -> vector<128x128xf32>
    %12 = arith.addf %8, %11 : vector<128x128xf32>
    %c0_9 = arith.constant 0 : index
    %c0_10 = arith.constant 0 : index
    %13 = vector.load %arg10[%c0_9, %c0_10] : memref<128x128xf32, #tpu.memory_space<vmem>>, vector<128x128xf32>
    tpu.vector_store %arg10[%c0_9, %c0_10], %12 {strides = array<i32>} : memref<128x128xf32, #tpu.memory_space<vmem>>, vector<128x128xf32>,
    %c0_i32_11 = arith.constant 0 : i32
    %14 = arith.cmpi eq, %arg2, %c0_i32_11 : i32
    %15 = arith.extui %14 : i1 to i32
    %c0_i32_12 = arith.constant 0 : i32
    %16 = arith.cmpi ne, %15, %c0_i32_12 : i32
    scf.if %16 {
      %c0_16 = arith.constant 0 : index
      %c0_17 = arith.constant 0 : index
      %22 = vector.load %arg10[%c0_16, %c0_17] : memref<128x128xf32, #tpu.memory_space<vmem>>, vector<128x128xf32>
      %c0_18 = arith.constant 0 : index
      %c0_19 = arith.constant 0 : index
      %23 = vector.load %arg7[%c0_18, %c0_19] : memref<128x128xf32, #tpu.memory_space<vmem>>, vector<128x128xf32>
      tpu.vector_store %arg7[%c0_18, %c0_19], %22 {strides = array<i32>} : memref<128x128xf32, #tpu.memory_space<vmem>>, vector<128x128xf32>,
      %c0_20 = arith.constant 0 : index
      %c0_21 = arith.constant 0 : index
      %24 = vector.load %arg11[%c0_20, %c0_21] : memref<1x128xf32, #tpu.memory_space<vmem>>, vector<1x128xf32>
      %cst_22 = arith.constant dense<0.000000e+00> : vector<128xf32>
      %25 = vector.multi_reduction <add>, %22, %cst_22 [0] : vector<128x128xf32> to vector<128xf32>
      %26 = vector.shape_cast %25 : vector<128xf32> to vector<1x128xf32>
      %27 = arith.addf %24, %26 : vector<1x128xf32>
      %c0_23 = arith.constant 0 : index
      %c0_24 = arith.constant 0 : index
      %28 = vector.load %arg11[%c0_23, %c0_24] : memref<1x128xf32, #tpu.memory_space<vmem>>, vector<1x128xf32>
      tpu.vector_store %arg11[%c0_23, %c0_24], %27 {strides = array<i32>} : memref<1x128xf32, #tpu.memory_space<vmem>>, vector<1x128xf32>,
      %c0_25 = arith.constant 0 : index
      %c0_26 = arith.constant 0 : index
      %29 = vector.load %arg12[%c0_25, %c0_26] : memref<1x128xf32, #tpu.memory_space<vmem>>, vector<1x128xf32>
      %30 = arith.mulf %22, %22 : vector<128x128xf32>
      %cst_27 = arith.constant dense<0.000000e+00> : vector<128xf32>
      %31 = vector.multi_reduction <add>, %30, %cst_27 [0] : vector<128x128xf32> to vector<128xf32>
      %32 = vector.shape_cast %31 : vector<128xf32> to vector<1x128xf32>
      %33 = arith.addf %29, %32 : vector<1x128xf32>
      %c0_28 = arith.constant 0 : index
      %c0_29 = arith.constant 0 : index
      %34 = vector.load %arg12[%c0_28, %c0_29] : memref<1x128xf32, #tpu.memory_space<vmem>>, vector<1x128xf32>
      tpu.vector_store %arg12[%c0_28, %c0_29], %33 {strides = array<i32>} : memref<1x128xf32, #tpu.memory_space<vmem>>, vector<1x128xf32>,
    } else {
    }
    %c0_i32_13 = arith.constant 0 : i32
    %17 = arith.cmpi eq, %arg1, %c0_i32_13 : i32
    %c0_i32_14 = arith.constant 0 : i32
    %18 = arith.cmpi eq, %arg2, %c0_i32_14 : i32
    %19 = arith.andi %17, %18 : i1
    %20 = arith.extui %19 : i1 to i32
    %c0_i32_15 = arith.constant 0 : i32
    %21 = arith.cmpi ne, %20, %c0_i32_15 : i32
    scf.if %21 {
      %c0_16 = arith.constant 0 : index
      %c0_17 = arith.constant 0 : index
      %22 = vector.load %arg11[%c0_16, %c0_17] : memref<1x128xf32, #tpu.memory_space<vmem>>, vector<1x128xf32>
      %cst_18 = arith.constant 7.812500e-03 : f32
      %23 = vector.broadcast %cst_18 : f32 to vector<1x128xf32>
      %24 = arith.mulf %22, %23 : vector<1x128xf32>
      %c0_19 = arith.constant 0 : index
      %c0_20 = arith.constant 0 : index
      %25 = vector.load %arg12[%c0_19, %c0_20] : memref<1x128xf32, #tpu.memory_space<vmem>>, vector<1x128xf32>
      %cst_21 = arith.constant 7.812500e-03 : f32
      %26 = vector.broadcast %cst_21 : f32 to vector<1x128xf32>
      %27 = arith.mulf %25, %26 : vector<1x128xf32>
      %28 = arith.mulf %24, %24 : vector<1x128xf32>
      %29 = arith.subf %27, %28 : vector<1x128xf32>
      %cst_22 = arith.constant 0.000000e+00 : f32
      %30 = vector.broadcast %cst_22 : f32 to vector<1x128xf32>
      %31 = arith.maximumf %29, %30 : vector<1x128xf32>
      %cst_23 = arith.constant 9.99999974E-6 : f32
      %32 = vector.broadcast %cst_23 : f32 to vector<1x128xf32>
      %33 = arith.addf %31, %32 : vector<1x128xf32>
      %34 = math.rsqrt %33 : vector<1x128xf32>
      %c0_24 = arith.constant 0 : index
      %c0_25 = arith.constant 0 : index
      %35 = vector.load %arg5[%c0_24, %c0_25] : memref<1x128xf32, #tpu.memory_space<vmem>>, vector<1x128xf32>
      %36 = arith.mulf %35, %34 : vector<1x128xf32>
      %c0_26 = arith.constant 0 : index
      %c0_27 = arith.constant 0 : index
      %37 = vector.load %arg8[%c0_26, %c0_27] : memref<1x128xf32, #tpu.memory_space<vmem>>, vector<1x128xf32>
      tpu.vector_store %arg8[%c0_26, %c0_27], %36 {strides = array<i32>} : memref<1x128xf32, #tpu.memory_space<vmem>>, vector<1x128xf32>,
      %c0_28 = arith.constant 0 : index
      %c0_29 = arith.constant 0 : index
      %38 = vector.load %arg6[%c0_28, %c0_29] : memref<1x128xf32, #tpu.memory_space<vmem>>, vector<1x128xf32>
      %39 = arith.mulf %24, %36 : vector<1x128xf32>
      %40 = arith.subf %38, %39 : vector<1x128xf32>
      %c0_30 = arith.constant 0 : index
      %c0_31 = arith.constant 0 : index
      %41 = vector.load %arg9[%c0_30, %c0_31] : memref<1x128xf32, #tpu.memory_space<vmem>>, vector<1x128xf32>
      tpu.vector_store %arg9[%c0_30, %c0_31], %40 {strides = array<i32>} : memref<1x128xf32, #tpu.memory_space<vmem>>, vector<1x128xf32>,
    } else {
    }
    return
  }
  func.func @transform_0(%arg0: i32, %arg1: i32, %arg2: i32) -> (i32, i32) {
    %c0_i32 = arith.constant 0 : i32
    return %arg1, %arg2 : i32, i32
  }
  func.func @transform_1(%arg0: i32, %arg1: i32, %arg2: i32) -> (i32, i32) {
    %c0_i32 = arith.constant 0 : i32
    return %arg2, %arg0 : i32, i32
  }
  func.func @transform_2(%arg0: i32, %arg1: i32, %arg2: i32) -> (i32, i32) {
    %c0_i32 = arith.constant 0 : i32
    %c0_i32_0 = arith.constant 0 : i32
    return %c0_i32, %arg0 : i32, i32
  }
  func.func @transform_3(%arg0: i32, %arg1: i32, %arg2: i32) -> (i32, i32) {
    %c0_i32 = arith.constant 0 : i32
    %c0_i32_0 = arith.constant 0 : i32
    return %c0_i32, %arg0 : i32, i32
  }
  func.func @transform_4(%arg0: i32, %arg1: i32, %arg2: i32) -> (i32, i32) {
    %c0_i32 = arith.constant 0 : i32
    return %arg1, %arg0 : i32, i32
  }
  func.func @transform_5(%arg0: i32, %arg1: i32, %arg2: i32) -> (i32, i32) {
    %c0_i32 = arith.constant 0 : i32
    %c0_i32_0 = arith.constant 0 : i32
    return %c0_i32, %arg0 : i32, i32
  }
  func.func @transform_6(%arg0: i32, %arg1: i32, %arg2: i32) -> (i32, i32) {
    %c0_i32 = arith.constant 0 : i32
    %c0_i32_0 = arith.constant 0 : i32
    return %c0_i32, %arg0 : i32, i32
  }
}

</mosaic_0001>

<llo_original>
// kernel: tpu_custom_call.1
$region0: #{tpu_custom_call.1}
  #allocation0 [shape = 'u32[]', space=smem, size = 0x4, offset = 0x4, fixed_abs, tag = 'smem constant byte address 0x4 - core index']
  #allocation1 [shape = 'u32[72,128]{1,0:T(1,128)}', space=vmem, size = 0x9000, scoped, tag = 'internal scratch']
  #allocation2 [shape = 'f32[128,128]{1,0:T(8,128)}', space=vmem, size = 0x10000, scoped, tag = 'scratch operand']
  #allocation3 [shape = 'f32[1,128]{1,0:T(1,128)}', space=vmem, size = 0x200, scoped, tag = 'scratch operand']
  #allocation4 [shape = 'f32[1,128]{1,0:T(1,128)}', space=vmem, size = 0x200, scoped, tag = 'scratch operand']
  %s0 = inlined_call_operand.hbm [shape: bf16[128,128], index: 0, kind: input, shape index: {}]
  %s1 = inlined_call_operand.hbm [shape: bf16[128,128], index: 1, kind: input, shape index: {}]
  %s2 = inlined_call_operand.vmem [shape: f32[1,128], index: 2, kind: input, shape index: {}]
  %s3 = inlined_call_operand.vmem [shape: f32[1,128], index: 3, kind: input, shape index: {}]
  %s4 = inlined_call_operand.hbm [shape: f32[128,128], index: 4, kind: output, shape index: {0}]
  %s5 = inlined_call_operand.hbm [shape: f32[1,128], index: 5, kind: output, shape index: {1}]
  %s6 = inlined_call_operand.hbm [shape: f32[1,128], index: 6, kind: output, shape index: {2}]
  %7 = xla_tuple %s4, %s5, %s6
  %s8 = sld [smem:[#allocation0]]
  $region66: #{tpu_custom_call.1} parent=0
    _
  %s10 = ssub.s32 1, %s8
  %s11 = scalar_select 0, %s10, %s8
  $region1: #{tpu_custom_call.1} parent=0
    #allocation5 [shape = 'u8[32768]{0}', space=vmem, size = 0x8000, scoped, tag = 'input window, operand 0, single buffered']
    #allocation6 [shape = 's32[1]{0}', space=sflag, size = 0x4, scoped, tag = 'scoped memory for tpu_custom_call.1']
    #allocation7 [shape = 's32[1]{0}', space=sflag, size = 0x4, scoped, tag = 'scoped memory for tpu_custom_call.1']
    #allocation8 [shape = 'u8[32768]{0}', space=vmem, size = 0x8000, scoped, tag = 'input window, operand 1, single buffered']
    #allocation9 [shape = 's32[1]{0}', space=sflag, size = 0x4, scoped, tag = 'scoped memory for tpu_custom_call.1']
    #allocation10 [shape = 'u8[65536]{0}', space=vmem, size = 0x10000, scoped, tag = 'output window, operand 0, single buffered']
    #allocation11 [shape = 'u8[512]{0}', space=vmem, size = 0x400, scoped, tag = 'output window, operand 1, single buffered']
    #allocation12 [shape = 's32[1]{0}', space=sflag, size = 0x4, scoped, tag = 'scoped memory for tpu_custom_call.1']
    #allocation13 [shape = 'u8[512]{0}', space=vmem, size = 0x400, scoped, tag = 'output window, operand 2, single buffered']
    %12 = vsyncpa [#allocation6], 0
    %13 = vsyncpa [#allocation9], 0
    %14 = vsyncpa [#allocation7], 0
    %15 = vsyncpa [#allocation12], 0
    // Predicated region
    $region2: #{tpu_custom_call.1} parent=1 // pred_check
      _
    $region3: #{tpu_custom_call.1} parent=1 // pred_check_branch
      %17 = sbr.rel (0) target = $region5
    $region4: #{tpu_custom_call.1} parent=1 // pred_region
      %19 = vsyncadd [#allocation6], 0
      %s20 = sshll.u32 %s0, 4
      %s21 = int_to_ptr.hbm [resolvable:$true] %s20
      %s22 = sshll.u32 [#allocation5], 4
      %s23 = int_to_ptr.vmem [resolvable:$true] %s22
      %28 = dma.hbm_to_vmem [thread:$0]  %s21, 1024, %s23, [#allocation6], 64, 64, 4
    $region5: #{tpu_custom_call.1} parent=1 // pred_fallthru
      _
    // Predicated region
    $region6: #{tpu_custom_call.1} parent=1 // pred_check
      _
    $region7: #{tpu_custom_call.1} parent=1 // pred_check_branch
      %30 = sbr.rel (0) target = $region9
    $region8: #{tpu_custom_call.1} parent=1 // pred_region
      %32 = vsyncadd [#allocation9], 0
      %s33 = sshll.u32 %s1, 4
      %s34 = int_to_ptr.hbm [resolvable:$true] %s33
      %s35 = sshll.u32 [#allocation8], 4
      %s36 = int_to_ptr.vmem [resolvable:$true] %s35
      %41 = dma.hbm_to_vmem [thread:$0]  %s34, 1024, %s36, [#allocation9], 64, 64, 4
    $region9: #{tpu_custom_call.1} parent=1 // pred_fallthru
      _
    // Predicated region
    $region10: #{tpu_custom_call.1} parent=1 // pred_check
      _
    $region11: #{tpu_custom_call.1} parent=1 // pred_check_branch
      %43 = sbr.rel (0) target = $region13
    $region12: #{tpu_custom_call.1} parent=1 // pred_region
      _
    $region13: #{tpu_custom_call.1} parent=1 // pred_fallthru
      _
    // Predicated region
    $region14: #{tpu_custom_call.1} parent=1 // pred_check
      _
    $region15: #{tpu_custom_call.1} parent=1 // pred_check_branch
      %45 = sbr.rel (0) target = $region17
    $region16: #{tpu_custom_call.1} parent=1 // pred_region
      _
    $region17: #{tpu_custom_call.1} parent=1 // pred_fallthru
      _
    // Predicated region
    $region18: #{tpu_custom_call.1} parent=1 // pred_check
      _
    $region19: #{tpu_custom_call.1} parent=1 // pred_check_branch
      %47 = sbr.rel (0) target = $region21
    $region20: #{tpu_custom_call.1} parent=1 // pred_region
      %49 = dma.done [#allocation6], 1024
    $region21: #{tpu_custom_call.1} parent=1 // pred_fallthru
      _
    // Predicated region
    $region22: #{tpu_custom_call.1} parent=1 // pred_check
      _
    $region23: #{tpu_custom_call.1} parent=1 // pred_check_branch
      %51 = sbr.rel (0) target = $region25
    $region24: #{tpu_custom_call.1} parent=1 // pred_region
      %53 = dma.done [#allocation9], 1024
    $region25: #{tpu_custom_call.1} parent=1 // pred_fallthru
      _
    %p54 = scmp.eq.s32.totalorder 0, 0
    // Predicated region
    $region26: #{tpu_custom_call.1} parent=1 // pred_check
      %p55 = pneg %p54
    $region27: #{tpu_custom_call.1} parent=1 // pred_check_branch
      %57 = sbr.rel (%p55) target = $region29
    $region28: #{tpu_custom_call.1} parent=1 // pred_region
      %58 = vst [vmem:[#allocation2] sm:$0xff] 0.0
      %59 = vst [vmem:[#allocation2 + $0x8] sm:$0xff] 0.0
      %60 = vst [vmem:[#allocation2 + $0x10] sm:$0xff] 0.0
      %61 = vst [vmem:[#allocation2 + $0x18] sm:$0xff] 0.0
      %62 = vst [vmem:[#allocation2 + $0x20] sm:$0xff] 0.0
      %63 = vst [vmem:[#allocation2 + $0x28] sm:$0xff] 0.0
      %64 = vst [vmem:[#allocation2 + $0x30] sm:$0xff] 0.0
      %65 = vst [vmem:[#allocation2 + $0x38] sm:$0xff] 0.0
      %66 = vst [vmem:[#allocation2 + $0x40] sm:$0xff] 0.0
      %67 = vst [vmem:[#allocation2 + $0x48] sm:$0xff] 0.0
      %68 = vst [vmem:[#allocation2 + $0x50] sm:$0xff] 0.0
      %69 = vst [vmem:[#allocation2 + $0x58] sm:$0xff] 0.0
      %70 = vst [vmem:[#allocation2 + $0x60] sm:$0xff] 0.0
      %71 = vst [vmem:[#allocation2 + $0x68] sm:$0xff] 0.0
      %72 = vst [vmem:[#allocation2 + $0x70] sm:$0xff] 0.0
      %73 = vst [vmem:[#allocation2 + $0x78] sm:$0xff] 0.0
    $region29: #{tpu_custom_call.1} parent=1 // pred_fallthru
      _
    %p74 = scmp.eq.s32.totalorder 0, 0
    %p75 = pnand %p74, %p54
    %p76 = pneg %p75
    // Predicated region
    $region30: #{tpu_custom_call.1} parent=1 // pred_check
      _
    $region31: #{tpu_custom_call.1} parent=1 // pred_check_branch
      %78 = sbr.rel (%p75) target = $region33
    $region32: #{tpu_custom_call.1} parent=1 // pred_region
      %79 = vst [vmem:[#allocation3] sm:$0x1] 0.0
      %80 = vst [vmem:[#allocation4] sm:$0x1] 0.0
    $region33: #{tpu_custom_call.1} parent=1 // pred_fallthru
      _
    %v81 = vld [vmem:[#allocation2] sm:$0xff]
    %v82 = vld [vmem:[#allocation2 + $0x8] sm:$0xff]
    %v83 = vld [vmem:[#allocation2 + $0x10] sm:$0xff]
    %v84 = vld [vmem:[#allocation2 + $0x18] sm:$0xff]
    %v85 = vld [vmem:[#allocation2 + $0x20] sm:$0xff]
    %v86 = vld [vmem:[#allocation2 + $0x28] sm:$0xff]
    %v87 = vld [vmem:[#allocation2 + $0x30] sm:$0xff]
    %v88 = vld [vmem:[#allocation2 + $0x38] sm:$0xff]
    %v89 = vld [vmem:[#allocation2 + $0x40] sm:$0xff]
    %v90 = vld [vmem:[#allocation2 + $0x48] sm:$0xff]
    %v91 = vld [vmem:[#allocation2 + $0x50] sm:$0xff]
    %v92 = vld [vmem:[#allocation2 + $0x58] sm:$0xff]
    %v93 = vld [vmem:[#allocation2 + $0x60] sm:$0xff]
    %v94 = vld [vmem:[#allocation2 + $0x68] sm:$0xff]
    %v95 = vld [vmem:[#allocation2 + $0x70] sm:$0xff]
    %v96 = vld [vmem:[#allocation2 + $0x78] sm:$0xff]
    %v97 = vld [vmem:[#allocation5] sm:$0xf]
    %v98 = vld [vmem:[#allocation5 + $0x4] sm:$0xf]
    %v99 = vld [vmem:[#allocation5 + $0x8] sm:$0xf]
    %v100 = vld [vmem:[#allocation5 + $0xc] sm:$0xf]
    %v101 = vld [vmem:[#allocation5 + $0x10] sm:$0xf]
    %v102 = vld [vmem:[#allocation5 + $0x14] sm:$0xf]
    %v103 = vld [vmem:[#allocation5 + $0x18] sm:$0xf]
    %v104 = vld [vmem:[#allocation5 + $0x1c] sm:$0xf]
    %v105 = vld [vmem:[#allocation5 + $0x20] sm:$0xf]
    %v106 = vld [vmem:[#allocation5 + $0x24] sm:$0xf]
    %v107 = vld [vmem:[#allocation5 + $0x28] sm:$0xf]
    %v108 = vld [vmem:[#allocation5 + $0x2c] sm:$0xf]
    %v109 = vld [vmem:[#allocation5 + $0x30] sm:$0xf]
    %v110 = vld [vmem:[#allocation5 + $0x34] sm:$0xf]
    %v111 = vld [vmem:[#allocation5 + $0x38] sm:$0xf]
    %v112 = vld [vmem:[#allocation5 + $0x3c] sm:$0xf]
    %v113 = vld [vmem:[#allocation8] sm:$0xf]
    %v114 = vld [vmem:[#allocation8 + $0x4] sm:$0xf]
    %v115 = vld [vmem:[#allocation8 + $0x8] sm:$0xf]
    %v116 = vld [vmem:[#allocation8 + $0xc] sm:$0xf]
    %v117 = vld [vmem:[#allocation8 + $0x10] sm:$0xf]
    %v118 = vld [vmem:[#allocation8 + $0x14] sm:$0xf]
    %v119 = vld [vmem:[#allocation8 + $0x18] sm:$0xf]
    %v120 = vld [vmem:[#allocation8 + $0x1c] sm:$0xf]
    %v121 = vld [vmem:[#allocation8 + $0x20] sm:$0xf]
    %v122 = vld [vmem:[#allocation8 + $0x24] sm:$0xf]
    %v123 = vld [vmem:[#allocation8 + $0x28] sm:$0xf]
    %v124 = vld [vmem:[#allocation8 + $0x2c] sm:$0xf]
    %v125 = vld [vmem:[#allocation8 + $0x30] sm:$0xf]
    %v126 = vld [vmem:[#allocation8 + $0x34] sm:$0xf]
    %v127 = vld [vmem:[#allocation8 + $0x38] sm:$0xf]
    %v128 = vld [vmem:[#allocation8 + $0x3c] sm:$0xf]
    %v145 = vunpack.c.l.b16 %v97
    %v146 = vunpack.c.l.b16 %v98
    %v147 = vunpack.c.l.b16 %v99
    %v148 = vunpack.c.l.b16 %v100
    %v149 = vunpack.c.l.b16 %v101
    %v150 = vunpack.c.l.b16 %v102
    %v151 = vunpack.c.l.b16 %v103
    %v152 = vunpack.c.l.b16 %v104
    %v153 = vunpack.c.l.b16 %v105
    %v154 = vunpack.c.l.b16 %v106
    %v155 = vunpack.c.l.b16 %v107
    %v156 = vunpack.c.l.b16 %v108
    %v157 = vunpack.c.l.b16 %v109
    %v158 = vunpack.c.l.b16 %v110
    %v159 = vunpack.c.l.b16 %v111
    %v160 = vunpack.c.l.b16 %v112
    %v161 = vpack.c.b16 %v146, %v145
    %v162 = vpack.c.b16 %v148, %v147
    %v163 = vpack.c.b16 %v150, %v149
    %v164 = vpack.c.b16 %v152, %v151
    %v165 = vpack.c.b16 %v154, %v153
    %v166 = vpack.c.b16 %v156, %v155
    %v167 = vpack.c.b16 %v158, %v157
    %v168 = vpack.c.b16 %v160, %v159
    %v193 = vunpack.c.l.b16 %v113
    %v194 = vunpack.c.l.b16 %v114
    %v195 = vunpack.c.l.b16 %v115
    %v196 = vunpack.c.l.b16 %v116
    %v197 = vunpack.c.l.b16 %v117
    %v198 = vunpack.c.l.b16 %v118
    %v199 = vunpack.c.l.b16 %v119
    %v200 = vunpack.c.l.b16 %v120
    %v201 = vunpack.c.l.b16 %v121
    %v202 = vunpack.c.l.b16 %v122
    %v203 = vunpack.c.l.b16 %v123
    %v204 = vunpack.c.l.b16 %v124
    %v205 = vunpack.c.l.b16 %v125
    %v206 = vunpack.c.l.b16 %v126
    %v207 = vunpack.c.l.b16 %v127
    %v208 = vunpack.c.l.b16 %v128
    %v209 = vpack.c.b16 %v194, %v193
    %v210 = vpack.c.b16 %v196, %v195
    %v211 = vpack.c.b16 %v198, %v197
    %v212 = vpack.c.b16 %v200, %v199
    %v213 = vpack.c.b16 %v202, %v201
    %v214 = vpack.c.b16 %v204, %v203
    %v215 = vpack.c.b16 %v206, %v205
    %v216 = vpack.c.b16 %v208, %v207
    %225 = vmatpush.bf16.msra.mxu0 %v216
    %226 = vmatpush.bf16.msra.mxu0 %v215
    %227 = vmatpush.bf16.msra.mxu0 %v214
    %228 = vmatpush.bf16.msra.mxu0 %v213
    %229 = vmatpush.bf16.msra.mxu0 %v212
    %230 = vmatpush.bf16.msra.mxu0 %v211
    %231 = vmatpush.bf16.msra.mxu0 %v210
    %232 = vmatpush.bf16.msra.mxu0 %v209
    %233 = vmatmul.bf16.gmra.mxu0 %v161
    %v234 = vpop.f32.mrf.mxu0
    %v235 = vadd.f32 0.0, %v234
    %v236 = vpop.f32.mrf.mxu0
    %v237 = vadd.f32 0.0, %v236
    %238 = vmatmul.bf16.gmra.mxu0 %v162
    %v239 = vpop.f32.mrf.mxu0
    %v240 = vadd.f32 0.0, %v239
    %v241 = vpop.f32.mrf.mxu0
    %v242 = vadd.f32 0.0, %v241
    %243 = vmatmul.bf16.gmra.mxu0 %v163
    %v244 = vpop.f32.mrf.mxu0
    %v245 = vadd.f32 0.0, %v244
    %v246 = vpop.f32.mrf.mxu0
    %v247 = vadd.f32 0.0, %v246
    %248 = vmatmul.bf16.gmra.mxu0 %v164
    %v249 = vpop.f32.mrf.mxu0
    %v250 = vadd.f32 0.0, %v249
    %v251 = vpop.f32.mrf.mxu0
    %v252 = vadd.f32 0.0, %v251
    %253 = vmatmul.bf16.gmra.mxu0 %v165
    %v254 = vpop.f32.mrf.mxu0
    %v255 = vadd.f32 0.0, %v254
    %v256 = vpop.f32.mrf.mxu0
    %v257 = vadd.f32 0.0, %v256
    %258 = vmatmul.bf16.gmra.mxu0 %v166
    %v259 = vpop.f32.mrf.mxu0
    %v260 = vadd.f32 0.0, %v259
    %v261 = vpop.f32.mrf.mxu0
    %v262 = vadd.f32 0.0, %v261
    %263 = vmatmul.bf16.gmra.mxu0 %v167
    %v264 = vpop.f32.mrf.mxu0
    %v265 = vadd.f32 0.0, %v264
    %v266 = vpop.f32.mrf.mxu0
    %v267 = vadd.f32 0.0, %v266
    %268 = vmatmul.bf16.gmra.mxu0 %v168
    %v269 = vpop.f32.mrf.mxu0
    %v270 = vadd.f32 0.0, %v269
    %v271 = vpop.f32.mrf.mxu0
    %v272 = vadd.f32 0.0, %v271
    %273 = vdwg.mxu0
    %v274 = vadd.f32 %v81, %v235
    %v275 = vadd.f32 %v82, %v237
    %v276 = vadd.f32 %v83, %v240
    %v277 = vadd.f32 %v84, %v242
    %v278 = vadd.f32 %v85, %v245
    %v279 = vadd.f32 %v86, %v247
    %v280 = vadd.f32 %v87, %v250
    %v281 = vadd.f32 %v88, %v252
    %v282 = vadd.f32 %v89, %v255
    %v283 = vadd.f32 %v90, %v257
    %v284 = vadd.f32 %v91, %v260
    %v285 = vadd.f32 %v92, %v262
    %v286 = vadd.f32 %v93, %v265
    %v287 = vadd.f32 %v94, %v267
    %v288 = vadd.f32 %v95, %v270
    %v289 = vadd.f32 %v96, %v272
    %290 = vst [vmem:[#allocation2] sm:$0xff] %v274
    %291 = vst [vmem:[#allocation2 + $0x8] sm:$0xff] %v275
    %292 = vst [vmem:[#allocation2 + $0x10] sm:$0xff] %v276
    %293 = vst [vmem:[#allocation2 + $0x18] sm:$0xff] %v277
    %294 = vst [vmem:[#allocation2 + $0x20] sm:$0xff] %v278
    %295 = vst [vmem:[#allocation2 + $0x28] sm:$0xff] %v279
    %296 = vst [vmem:[#allocation2 + $0x30] sm:$0xff] %v280
    %297 = vst [vmem:[#allocation2 + $0x38] sm:$0xff] %v281
    %298 = vst [vmem:[#allocation2 + $0x40] sm:$0xff] %v282
    %299 = vst [vmem:[#allocation2 + $0x48] sm:$0xff] %v283
    %300 = vst [vmem:[#allocation2 + $0x50] sm:$0xff] %v284
    %301 = vst [vmem:[#allocation2 + $0x58] sm:$0xff] %v285
    %302 = vst [vmem:[#allocation2 + $0x60] sm:$0xff] %v286
    %303 = vst [vmem:[#allocation2 + $0x68] sm:$0xff] %v287
    %304 = vst [vmem:[#allocation2 + $0x70] sm:$0xff] %v288
    %305 = vst [vmem:[#allocation2 + $0x78] sm:$0xff] %v289
    // Predicated region
    $region34: #{tpu_custom_call.1} parent=1 // pred_check
      %p306 = pneg %p54
    $region35: #{tpu_custom_call.1} parent=1 // pred_check_branch
      %308 = sbr.rel (%p306) target = $region37
    $region36: #{tpu_custom_call.1} parent=1 // pred_region
      %v309 = vld [vmem:[#allocation2] sm:$0xff]
      %v310 = vld [vmem:[#allocation2 + $0x8] sm:$0xff]
      %v311 = vld [vmem:[#allocation2 + $0x10] sm:$0xff]
      %v312 = vld [vmem:[#allocation2 + $0x18] sm:$0xff]
      %v313 = vld [vmem:[#allocation2 + $0x20] sm:$0xff]
      %v314 = vld [vmem:[#allocation2 + $0x28] sm:$0xff]
      %v315 = vld [vmem:[#allocation2 + $0x30] sm:$0xff]
      %v316 = vld [vmem:[#allocation2 + $0x38] sm:$0xff]
      %v317 = vld [vmem:[#allocation2 + $0x40] sm:$0xff]
      %v318 = vld [vmem:[#allocation2 + $0x48] sm:$0xff]
      %v319 = vld [vmem:[#allocation2 + $0x50] sm:$0xff]
      %v320 = vld [vmem:[#allocation2 + $0x58] sm:$0xff]
      %v321 = vld [vmem:[#allocation2 + $0x60] sm:$0xff]
      %v322 = vld [vmem:[#allocation2 + $0x68] sm:$0xff]
      %v323 = vld [vmem:[#allocation2 + $0x70] sm:$0xff]
      %v324 = vld [vmem:[#allocation2 + $0x78] sm:$0xff]
      %325 = vst [vmem:[#allocation10] sm:$0xff] %v309
      %326 = vst [vmem:[#allocation10 + $0x8] sm:$0xff] %v310
      %327 = vst [vmem:[#allocation10 + $0x10] sm:$0xff] %v311
      %328 = vst [vmem:[#allocation10 + $0x18] sm:$0xff] %v312
      %329 = vst [vmem:[#allocation10 + $0x20] sm:$0xff] %v313
      %330 = vst [vmem:[#allocation10 + $0x28] sm:$0xff] %v314
      %331 = vst [vmem:[#allocation10 + $0x30] sm:$0xff] %v315
      %332 = vst [vmem:[#allocation10 + $0x38] sm:$0xff] %v316
      %333 = vst [vmem:[#allocation10 + $0x40] sm:$0xff] %v317
      %334 = vst [vmem:[#allocation10 + $0x48] sm:$0xff] %v318
      %335 = vst [vmem:[#allocation10 + $0x50] sm:$0xff] %v319
      %336 = vst [vmem:[#allocation10 + $0x58] sm:$0xff] %v320
      %337 = vst [vmem:[#allocation10 + $0x60] sm:$0xff] %v321
      %338 = vst [vmem:[#allocation10 + $0x68] sm:$0xff] %v322
      %339 = vst [vmem:[#allocation10 + $0x70] sm:$0xff] %v323
      %340 = vst [vmem:[#allocation10 + $0x78] sm:$0xff] %v324
      %v341 = vld [vmem:[#allocation3] sm:$0x1]
      %v342 = vadd.f32 %v309, %v310
      %v343 = vadd.f32 %v342, %v311
      %v344 = vadd.f32 %v343, %v312
      %v345 = vadd.f32 %v344, %v313
      %v346 = vadd.f32 %v345, %v314
      %v347 = vadd.f32 %v346, %v315
      %v348 = vadd.f32 %v347, %v316
      %v349 = vadd.f32 %v348, %v317
      %v350 = vadd.f32 %v349, %v318
      %v351 = vadd.f32 %v350, %v319
      %v352 = vadd.f32 %v351, %v320
      %v353 = vadd.f32 %v352, %v321
      %v354 = vadd.f32 %v353, %v322
      %v355 = vadd.f32 %v354, %v323
      %v356 = vadd.f32 %v355, %v324
      %v357 = vrot.slane %v356, 4
      %v358 = vadd.f32 %v356, %v357
      %v359 = vrot.slane %v358, 2
      %v360 = vadd.f32 %v358, %v359
      %v361 = vrot.slane %v360, 1
      %v362 = vadd.f32 %v360, %v361
      %v363 = vadd.f32 %v341, %v362
      %364 = vst [vmem:[#allocation3] sm:$0x1] %v363
      %v365 = vld [vmem:[#allocation4] sm:$0x1]
      %v366 = vmul.f32 %v309, %v309
      %v367 = vmul.f32 %v310, %v310
      %v368 = vmul.f32 %v311, %v311
      %v369 = vmul.f32 %v312, %v312
      %v370 = vmul.f32 %v313, %v313
      %v371 = vmul.f32 %v314, %v314
      %v372 = vmul.f32 %v315, %v315
      %v373 = vmul.f32 %v316, %v316
      %v374 = vmul.f32 %v317, %v317
      %v375 = vmul.f32 %v318, %v318
      %v376 = vmul.f32 %v319, %v319
      %v377 = vmul.f32 %v320, %v320
      %v378 = vmul.f32 %v321, %v321
      %v379 = vmul.f32 %v322, %v322
      %v380 = vmul.f32 %v323, %v323
      %v381 = vmul.f32 %v324, %v324
      %v382 = vadd.f32 %v366, %v367
      %v383 = vadd.f32 %v382, %v368
      %v384 = vadd.f32 %v383, %v369
      %v385 = vadd.f32 %v384, %v370
      %v386 = vadd.f32 %v385, %v371
      %v387 = vadd.f32 %v386, %v372
      %v388 = vadd.f32 %v387, %v373
      %v389 = vadd.f32 %v388, %v374
      %v390 = vadd.f32 %v389, %v375
      %v391 = vadd.f32 %v390, %v376
      %v392 = vadd.f32 %v391, %v377
      %v393 = vadd.f32 %v392, %v378
      %v394 = vadd.f32 %v393, %v379
      %v395 = vadd.f32 %v394, %v380
      %v396 = vadd.f32 %v395, %v381
      %v397 = vrot.slane %v396, 4
      %v398 = vadd.f32 %v396, %v397
      %v399 = vrot.slane %v398, 2
      %v400 = vadd.f32 %v398, %v399
      %v401 = vrot.slane %v400, 1
      %v402 = vadd.f32 %v400, %v401
      %v403 = vadd.f32 %v365, %v402
      %404 = vst [vmem:[#allocation4] sm:$0x1] %v403
    $region37: #{tpu_custom_call.1} parent=1 // pred_fallthru
      _
    // Predicated region
    $region38: #{tpu_custom_call.1} parent=1 // pred_check
      _
    $region39: #{tpu_custom_call.1} parent=1 // pred_check_branch
      %406 = sbr.rel (%p75) target = $region41
    $region40: #{tpu_custom_call.1} parent=1 // pred_region
      %v407 = vld [vmem:[#allocation3] sm:$0x1]
      %v408 = vmul.f32 %v407, 0.0078125
      %v409 = vld [vmem:[#allocation4] sm:$0x1]
      %v410 = vmul.f32 %v409, 0.0078125
      %v411 = vmul.f32 %v408, %v408
      %v412 = vsub.f32 %v410, %v411
      %v413 = vmax.f32 %v412, 0.0
      %v414 = vadd.f32 %v413, 1e-05
      %v415 = vrsqrt.pop %v414
      %v416 = vmul.f32 %v415, %v414
      %v417 = vmul.f32 %v416, %v415
      %v418 = vmul.f32 0.5, %v417
      %v419 = vsub.f32 1.5, %v418
      %v420 = vmul.f32 %v415, %v419
      %vm421 = vweird.f32 %v414
      %vm422 = vweird.f32 %v415
      %vm423 = vmor %vm421, %vm422
      %v424 = vsel %vm423, %v415, %v420
      %v425 = vld [vmem:[%s2] sm:$0x1]
      %v426 = vmul.f32 %v425, %v424
      %427 = vst [vmem:[#allocation11] sm:$0x1] %v426
      %v428 = vld [vmem:[%s3] sm:$0x1]
      %v429 = vmul.f32 %v408, %v426
      %v430 = vsub.f32 %v428, %v429
      %431 = vst [vmem:[#allocation13] sm:$0x1] %v430
    $region41: #{tpu_custom_call.1} parent=1 // pred_fallthru
      _
    // Predicated region
    $region42: #{tpu_custom_call.1} parent=1 // pred_check
      _
    $region43: #{tpu_custom_call.1} parent=1 // pred_check_branch
      %433 = sbr.rel (0) target = $region45
    $region44: #{tpu_custom_call.1} parent=1 // pred_region
      %435 = vsyncadd [#allocation7], 0
      %s436 = sshll.u32 [#allocation10], 4
      %s437 = int_to_ptr.vmem [resolvable:$true] %s436
      %s438 = sshll.u32 %s4, 4
      %s439 = int_to_ptr.hbm [resolvable:$true] %s438
      %444 = dma.vmem_to_hbm [thread:$0]  %s437, 2048, %s439, [#allocation7], 128, 128, 8
    $region45: #{tpu_custom_call.1} parent=1 // pred_fallthru
      _
    // Predicated region
    $region46: #{tpu_custom_call.1} parent=1 // pred_check
      _
    $region47: #{tpu_custom_call.1} parent=1 // pred_check_branch
      %446 = sbr.rel (0) target = $region49
    $region48: #{tpu_custom_call.1} parent=1 // pred_region
      %448 = vsyncadd [#allocation12], 0
      %s450 = sshll.u32 [#allocation11], 4
      %s451 = int_to_ptr.vmem [resolvable:$true] %s450
      %s452 = sshll.u32 %s5, 4
      %s453 = int_to_ptr.hbm [resolvable:$true] %s452
      %455 = dma.vmem_to_hbm [thread:$0]  %s451, 16, %s453, [#allocation12]
    $region49: #{tpu_custom_call.1} parent=1 // pred_fallthru
      _
    // Predicated region
    $region50: #{tpu_custom_call.1} parent=1 // pred_check
      _
    $region51: #{tpu_custom_call.1} parent=1 // pred_check_branch
      %457 = sbr.rel (0) target = $region53
    $region52: #{tpu_custom_call.1} parent=1 // pred_region
      %459 = vsyncadd [#allocation12], 0
      %s461 = sshll.u32 [#allocation13], 4
      %s462 = int_to_ptr.vmem [resolvable:$true] %s461
      %s463 = sshll.u32 %s6, 4
      %s464 = int_to_ptr.hbm [resolvable:$true] %s463
      %466 = dma.vmem_to_hbm [thread:$0]  %s462, 16, %s464, [#allocation12]
    $region53: #{tpu_custom_call.1} parent=1 // pred_fallthru
      _
    // Predicated region
    $region54: #{tpu_custom_call.1} parent=1 // pred_check
      _
    $region55: #{tpu_custom_call.1} parent=1 // pred_check_branch
      %468 = sbr.rel (0) target = $region57
    $region56: #{tpu_custom_call.1} parent=1 // pred_region
      %470 = dma.done [#allocation7], 2048
    $region57: #{tpu_custom_call.1} parent=1 // pred_fallthru
      _
    // Predicated region
    $region58: #{tpu_custom_call.1} parent=1 // pred_check
      _
    $region59: #{tpu_custom_call.1} parent=1 // pred_check_branch
      %472 = sbr.rel (0) target = $region61
    $region60: #{tpu_custom_call.1} parent=1 // pred_region
      %474 = dma.done [#allocation12], 16
    $region61: #{tpu_custom_call.1} parent=1 // pred_fallthru
      _
    // Predicated region
    $region62: #{tpu_custom_call.1} parent=1 // pred_check
      _
    $region63: #{tpu_custom_call.1} parent=1 // pred_check_branch
      %476 = sbr.rel (0) target = $region65
    $region64: #{tpu_custom_call.1} parent=1 // pred_region
      %478 = dma.done [#allocation12], 16
    $region65: #{tpu_custom_call.1} parent=1 // pred_fallthru
      _
    %479 = vsyncpa [#allocation6], 1
    %480 = vsyncpa [#allocation9], 1
    %481 = vsyncpa [#allocation7], 1
    %482 = vsyncpa [#allocation12], 1

</llo_original>
